<compile_context>
chip_gen: v6e
topology: v6e:2x2x1
jax: 0.10.0
libtpu: 0.0.40
codegen_flags: <defaults>
</compile_context>

<pallas_src>
import functools

import jax
import jax.numpy as jnp
import numpy as np
from jax import lax
from jax.experimental import pallas as pl
from jax.experimental.pallas import tpu as pltpu


def _pick_tile_rows(Ho, Wo, n_images, *, target_lanes=512, min_steps=4):
    """Largest output-row tile whose flattened lane count (rows*Wo) is a
    multiple of 128, bounded by target_lanes, keeping >= min_steps total grid
    steps when possible (>= 2 steps per TensorCore on v7x)."""
    cands = [r for r in range(1, Ho + 1)
             if Ho % r == 0 and (r * Wo) % 128 == 0]
    if not cands:
        return Ho  # full-image tile; full-dim block is always a legal BlockSpec
    steps = lambda r: n_images * (Ho // r)
    ok = [r for r in cands if steps(r) >= min_steps]
    pool = ok if ok else cands
    fit = [r for r in pool if r * Wo <= target_lanes]
    return max(fit) if fit else min(pool)


def _conv_bn_relu_kernel(x_ref, w_ref, b_ref, o_ref, *,
                         KH, KW, stride, tile_rows, Wo, Cin):
    """One (image, output-row-tile) per grid step.

    x_ref: (1, Hp, Wp, Cin) bf16  padded NHWC image (revisited across row tiles)
    w_ref: (Cout, K)        bf16  BN-scale-folded weights, K = KH*KW*Cin
    b_ref: (Cout, 1)        f32   folded BN bias
    o_ref: (1, Cout, TM)    f32   TM = tile_rows*Wo, lane-dense output tile
    """
    rb = pl.program_id(1)
    row_step = tile_rows * stride
    r0 = pl.multiple_of(rb * row_step, row_step)

    # In-VMEM im2col: one static strided slice per tap, concatenated along the
    # K (lane) axis -> (tile_rows, Wo, K).
    taps = []
    for kh in range(KH):
        for kw in range(KW):
            if stride == 1:
                t = x_ref[0, pl.ds(r0 + kh, tile_rows), pl.ds(kw, Wo), :]
            else:
                t = x_ref[0, pl.ds(r0 + kh, tile_rows, stride),
                          pl.ds(kw, Wo, stride), :]
            taps.append(t)
    p = jnp.concatenate(taps, axis=-1)                 # (tile_rows, Wo, K) bf16
    # Merge leading dims; lane dim untouched (layout-preserving when Wo%8==0).
    p = p.reshape(tile_rows * Wo, KH * KW * Cin)       # (TM, K)

    # Single fused GEMM, transposed so lanes = spatial (dense, 128-multiple),
    # sublanes = Cout:  acc[c, m] = sum_k w[c, k] * p[m, k]
    acc = lax.dot_general(w_ref[...], p,
                          dimension_numbers=(((1,), (1,)), ((), ())),
                          preferred_element_type=jnp.float32)  # (Cout, TM) f32

    y = acc + b_ref[...]                               # folded eval-mode BN bias
    o_ref[0] = jnp.maximum(y, 0.0).astype(o_ref.dtype)  # ReLU


def conv_layer_forward(x_nchw, weight, gamma, beta, running_mean, running_var,
                       *, stride=1, padding=0, eps=1e-5,
                       target_tile_lanes=512, min_grid_steps=4):
    """Matches ConvLayer.forward with eval-mode BatchNorm. NCHW in / NCHW out."""
    N, Cin, H, W = x_nchw.shape
    Cout, Cin_w, KH, KW = weight.shape
    assert Cin_w == Cin, "groups != 1 not supported"  # TODO(synk): groups>1

    Hp, Wp = H + 2 * padding, W + 2 * padding
    Ho = (Hp - KH) // stride + 1
    Wo = (Wp - KW) // stride + 1
    K = KH * KW * Cin

    # Channels-last activation (module-boundary plumbing only); bf16 for MXU.
    x = jnp.transpose(x_nchw.astype(jnp.bfloat16), (0, 2, 3, 1))      # NHWC
    if padding:
        x = jnp.pad(x, ((0, 0), (padding, padding), (padding, padding), (0, 0)))

    # Fold eval-mode BN: y = scale*conv(x,w) + bias = conv(x, w*scale) + bias.
    scale = (gamma / jnp.sqrt(running_var + eps)).astype(jnp.float32)
    bias = (beta.astype(jnp.float32)
            - running_mean.astype(jnp.float32) * scale).reshape(Cout, 1)
    # OIHW -> (Cout, KH, KW, Cin) -> (Cout, K); scale folded before bf16 cast.
    w = jnp.transpose(weight.astype(jnp.float32) * scale[:, None, None, None],
                      (0, 2, 3, 1)).reshape(Cout, K).astype(jnp.bfloat16)

    tile_rows = _pick_tile_rows(Ho, Wo, N, target_lanes=target_tile_lanes,
                                min_steps=min_grid_steps)
    TM = tile_rows * Wo
    grid = (N, Ho // tile_rows)

    kernel = functools.partial(_conv_bn_relu_kernel, KH=KH, KW=KW,
                               stride=stride, tile_rows=tile_rows,
                               Wo=Wo, Cin=Cin)

    out = pl.pallas_call(
        kernel,
        out_shape=jax.ShapeDtypeStruct((N, Cout, Ho * Wo), jnp.float32),
        grid_spec=pltpu.PrefetchScalarGridSpec(
            num_scalar_prefetch=0,
            grid=grid,
            in_specs=[
                # Whole padded image per batch index; block index is constant
                # across the row-tile axis, so it is DMA'd once and revisited.
                pl.BlockSpec((1, Hp, Wp, Cin), lambda n, rb: (n, 0, 0, 0)),
                pl.BlockSpec((Cout, K), lambda n, rb: (0, 0)),
                pl.BlockSpec((Cout, 1), lambda n, rb: (0, 0)),
            ],
            out_specs=pl.BlockSpec((1, Cout, TM), lambda n, rb: (n, 0, rb)),
        ),
        compiler_params=pltpu.CompilerParams(
            dimension_semantics=("parallel", "parallel"),
            vmem_limit_bytes=32 * 1024 * 1024,
        ),
    )(x, w, bias)

    # (N, Cout, Ho*Wo) is already NCHW-flat; splitting the minor dim is free.
    return out.reshape(N, Cout, Ho, Wo)


if __name__ == "__main__":
    # ConvLayer(in_channels=4, out_channels=8, kernel_size=3, stride=1, padding=1)
    N, Cin, H, W = 2, 4, 16, 16
    Cout, KH, KW = 8, 3, 3
    stride, padding, eps = 1, 1, 1e-5

    key = jax.random.PRNGKey(0)
    k_x, k_w, k_g, k_b, k_m, k_v = jax.random.split(key, 6)

    x = jax.random.normal(k_x, (N, Cin, H, W), dtype=jnp.float32)
    weight = 0.1 * jax.random.normal(k_w, (Cout, Cin, KH, KW), dtype=jnp.float32)
    gamma = 1.0 + 0.1 * jax.random.normal(k_g, (Cout,), dtype=jnp.float32)
    beta = 0.1 * jax.random.normal(k_b, (Cout,), dtype=jnp.float32)
    running_mean = 0.1 * jax.random.normal(k_m, (Cout,), dtype=jnp.float32)
    running_var = jnp.abs(1.0 + 0.1 * jax.random.normal(k_v, (Cout,), dtype=jnp.float32))

    out = conv_layer_forward(x, weight, gamma, beta, running_mean, running_var,
                             stride=stride, padding=padding, eps=eps)
    out = jax.block_until_ready(out)
    assert out.shape == (N, Cout, H, W), out.shape

    # Pure-JAX reference with the SAME quantization the kernel applies
    # (bf16 activations, BN scale folded into bf16 weights, f32 accumulate).
    scale = gamma / jnp.sqrt(running_var + eps)
    bias = beta - running_mean * scale
    x_q = x.astype(jnp.bfloat16).astype(jnp.float32)
    w_q = (weight * scale[:, None, None, None]).astype(jnp.bfloat16).astype(jnp.float32)
    ref_conv = lax.conv_general_dilated(
        x_q, w_q, window_strides=(stride, stride),
        padding=[(padding, padding), (padding, padding)],
        dimension_numbers=("NCHW", "OIHW", "NCHW"))
    ref = jnp.maximum(ref_conv + bias.reshape(1, Cout, 1, 1), 0.0)

    np.testing.assert_allclose(np.asarray(out), np.asarray(ref),
                               atol=2e-3, rtol=2e-3)

    print("KERNEL_OK")
</pallas_src>

<mosaic_0001>
module attributes {stable_mosaic.version = 11 : i64} {
  func.func @_conv_bn_relu_kernel(%arg0: i32, %arg1: i32, %arg2: memref<1x18x18x4xbf16, #tpu.memory_space<vmem>>, %arg3: memref<8x36xbf16, #tpu.memory_space<vmem>>, %arg4: memref<8x1xf32, #tpu.memory_space<vmem>>, %arg5: memref<1x8x128xf32, #tpu.memory_space<vmem>>) attributes {dimension_semantics = [#tpu.dimension_semantics<parallel>, #tpu.dimension_semantics<parallel>], iteration_bounds = array<i64: 2, 2>, scalar_prefetch = 0 : i64, scratch_operands = 0 : i64, tpu.core_type = #tpu.core_type<tc>, window_params = [{transform_indices = @transform_0, window_bounds = array<i64: 1, 18, 18, 4>}, {pipeline_mode = #tpu.pipeline_mode<synchronous>, transform_indices = @transform_1, window_bounds = array<i64: 8, 36>}, {pipeline_mode = #tpu.pipeline_mode<synchronous>, transform_indices = @transform_2, window_bounds = array<i64: 8, 1>}, {transform_indices = @transform_3, window_bounds = array<i64: 1, 8, 128>}]} {
    %c8_i32 = arith.constant 8 : i32
    %0 = arith.muli %arg1, %c8_i32 : i32
    %1 = tpu.assume_multiple %0, 8 : i32
    %c0_i32 = arith.constant 0 : i32
    %2 = arith.addi %1, %c0_i32 : i32
    %c0 = arith.constant 0 : index
    %3 = arith.index_cast %2 : i32 to index
    %c0_0 = arith.constant 0 : index
    %c0_1 = arith.constant 0 : index
    %4 = vector.load %arg2[%c0, %3, %c0_0, %c0_1] : memref<1x18x18x4xbf16, #tpu.memory_space<vmem>>, vector<1x8x16x4xbf16>
    %5 = vector.shape_cast %4 : vector<1x8x16x4xbf16> to vector<8x16x4xbf16>
    %c0_i32_2 = arith.constant 0 : i32
    %6 = arith.addi %1, %c0_i32_2 : i32
    %c0_3 = arith.constant 0 : index
    %7 = arith.index_cast %6 : i32 to index
    %c1 = arith.constant 1 : index
    %c0_4 = arith.constant 0 : index
    %8 = vector.load %arg2[%c0_3, %7, %c1, %c0_4] : memref<1x18x18x4xbf16, #tpu.memory_space<vmem>>, vector<1x8x16x4xbf16>
    %9 = vector.shape_cast %8 : vector<1x8x16x4xbf16> to vector<8x16x4xbf16>
    %c0_i32_5 = arith.constant 0 : i32
    %10 = arith.addi %1, %c0_i32_5 : i32
    %c0_6 = arith.constant 0 : index
    %11 = arith.index_cast %10 : i32 to index
    %c2 = arith.constant 2 : index
    %c0_7 = arith.constant 0 : index
    %12 = vector.load %arg2[%c0_6, %11, %c2, %c0_7] : memref<1x18x18x4xbf16, #tpu.memory_space<vmem>>, vector<1x8x16x4xbf16>
    %13 = vector.shape_cast %12 : vector<1x8x16x4xbf16> to vector<8x16x4xbf16>
    %c1_i32 = arith.constant 1 : i32
    %14 = arith.addi %1, %c1_i32 : i32
    %c0_8 = arith.constant 0 : index
    %15 = arith.index_cast %14 : i32 to index
    %c0_9 = arith.constant 0 : index
    %c0_10 = arith.constant 0 : index
    %16 = vector.load %arg2[%c0_8, %15, %c0_9, %c0_10] : memref<1x18x18x4xbf16, #tpu.memory_space<vmem>>, vector<1x8x16x4xbf16>
    %17 = vector.shape_cast %16 : vector<1x8x16x4xbf16> to vector<8x16x4xbf16>
    %c1_i32_11 = arith.constant 1 : i32
    %18 = arith.addi %1, %c1_i32_11 : i32
    %c0_12 = arith.constant 0 : index
    %19 = arith.index_cast %18 : i32 to index
    %c1_13 = arith.constant 1 : index
    %c0_14 = arith.constant 0 : index
    %20 = vector.load %arg2[%c0_12, %19, %c1_13, %c0_14] : memref<1x18x18x4xbf16, #tpu.memory_space<vmem>>, vector<1x8x16x4xbf16>
    %21 = vector.shape_cast %20 : vector<1x8x16x4xbf16> to vector<8x16x4xbf16>
    %c1_i32_15 = arith.constant 1 : i32
    %22 = arith.addi %1, %c1_i32_15 : i32
    %c0_16 = arith.constant 0 : index
    %23 = arith.index_cast %22 : i32 to index
    %c2_17 = arith.constant 2 : index
    %c0_18 = arith.constant 0 : index
    %24 = vector.load %arg2[%c0_16, %23, %c2_17, %c0_18] : memref<1x18x18x4xbf16, #tpu.memory_space<vmem>>, vector<1x8x16x4xbf16>
    %25 = vector.shape_cast %24 : vector<1x8x16x4xbf16> to vector<8x16x4xbf16>
    %c2_i32 = arith.constant 2 : i32
    %26 = arith.addi %1, %c2_i32 : i32
    %c0_19 = arith.constant 0 : index
    %27 = arith.index_cast %26 : i32 to index
    %c0_20 = arith.constant 0 : index
    %c0_21 = arith.constant 0 : index
    %28 = vector.load %arg2[%c0_19, %27, %c0_20, %c0_21] : memref<1x18x18x4xbf16, #tpu.memory_space<vmem>>, vector<1x8x16x4xbf16>
    %29 = vector.shape_cast %28 : vector<1x8x16x4xbf16> to vector<8x16x4xbf16>
    %c2_i32_22 = arith.constant 2 : i32
    %30 = arith.addi %1, %c2_i32_22 : i32
    %c0_23 = arith.constant 0 : index
    %31 = arith.index_cast %30 : i32 to index
    %c1_24 = arith.constant 1 : index
    %c0_25 = arith.constant 0 : index
    %32 = vector.load %arg2[%c0_23, %31, %c1_24, %c0_25] : memref<1x18x18x4xbf16, #tpu.memory_space<vmem>>, vector<1x8x16x4xbf16>
    %33 = vector.shape_cast %32 : vector<1x8x16x4xbf16> to vector<8x16x4xbf16>
    %c2_i32_26 = arith.constant 2 : i32
    %34 = arith.addi %1, %c2_i32_26 : i32
    %c0_27 = arith.constant 0 : index
    %35 = arith.index_cast %34 : i32 to index
    %c2_28 = arith.constant 2 : index
    %c0_29 = arith.constant 0 : index
    %36 = vector.load %arg2[%c0_27, %35, %c2_28, %c0_29] : memref<1x18x18x4xbf16, #tpu.memory_space<vmem>>, vector<1x8x16x4xbf16>
    %37 = vector.shape_cast %36 : vector<1x8x16x4xbf16> to vector<8x16x4xbf16>
    %38 = tpu.concatenate %5, %9, %13, %17, %21, %25, %29, %33, %37 in 2 : vector<8x16x4xbf16>, vector<8x16x4xbf16>, vector<8x16x4xbf16>, vector<8x16x4xbf16>, vector<8x16x4xbf16>, vector<8x16x4xbf16>, vector<8x16x4xbf16>, vector<8x16x4xbf16>, vector<8x16x4xbf16> -> vector<8x16x36xbf16>
    %39 = vector.shape_cast %38 : vector<8x16x36xbf16> to vector<128x36xbf16>
    %c0_30 = arith.constant 0 : index
    %c0_31 = arith.constant 0 : index
    %40 = vector.load %arg3[%c0_30, %c0_31] : memref<8x36xbf16, #tpu.memory_space<vmem>>, vector<8x36xbf16>
    %cst = arith.constant dense<0.000000e+00> : vector<8x128xf32>
    %41 = tpu.matmul %40, %39, %cst {dimension_numbers = #tpu.dot_dimension_numbers<[1], [1], [0], [0], [0, 0, 1, 0], [], []>} : vector<8x36xbf16>, vector<128x36xbf16>, vector<8x128xf32> -> vector<8x128xf32>
    %c0_32 = arith.constant 0 : index
    %c0_33 = arith.constant 0 : index
    %42 = vector.load %arg4[%c0_32, %c0_33] : memref<8x1xf32, #tpu.memory_space<vmem>>, vector<8x1xf32>
    %43 = vector.broadcast %42 : vector<8x1xf32> to vector<8x128xf32>
    %44 = arith.addf %41, %43 : vector<8x128xf32>
    %cst_34 = arith.constant 0.000000e+00 : f32
    %45 = vector.broadcast %cst_34 : f32 to vector<8x128xf32>
    %46 = arith.maximumf %44, %45 : vector<8x128xf32>
    %c0_35 = arith.constant 0 : index
    %c0_36 = arith.constant 0 : index
    %c0_37 = arith.constant 0 : index
    %47 = vector.load %arg5[%c0_35, %c0_36, %c0_37] : memref<1x8x128xf32, #tpu.memory_space<vmem>>, vector<1x8x128xf32>
    %48 = vector.shape_cast %47 : vector<1x8x128xf32> to vector<8x128xf32>
    %49 = vector.shape_cast %46 : vector<8x128xf32> to vector<1x8x128xf32>
    tpu.vector_store %arg5[%c0_35, %c0_36, %c0_37], %49 {strides = array<i32>} : memref<1x8x128xf32, #tpu.memory_space<vmem>>, vector<1x8x128xf32>,
    return
  }
  func.func @transform_0(%arg0: i32, %arg1: i32) -> (i32, i32, i32, i32) {
    %c0_i32 = arith.constant 0 : i32
    %c0_i32_0 = arith.constant 0 : i32
    %c0_i32_1 = arith.constant 0 : i32
    %c0_i32_2 = arith.constant 0 : i32
    return %arg0, %c0_i32, %c0_i32_0, %c0_i32_1 : i32, i32, i32, i32
  }
  func.func @transform_1(%arg0: i32, %arg1: i32) -> (i32, i32) {
    %c0_i32 = arith.constant 0 : i32
    %c0_i32_0 = arith.constant 0 : i32
    %c0_i32_1 = arith.constant 0 : i32
    return %c0_i32, %c0_i32_0 : i32, i32
  }
  func.func @transform_2(%arg0: i32, %arg1: i32) -> (i32, i32) {
    %c0_i32 = arith.constant 0 : i32
    %c0_i32_0 = arith.constant 0 : i32
    %c0_i32_1 = arith.constant 0 : i32
    return %c0_i32, %c0_i32_0 : i32, i32
  }
  func.func @transform_3(%arg0: i32, %arg1: i32) -> (i32, i32, i32) {
    %c0_i32 = arith.constant 0 : i32
    %c0_i32_0 = arith.constant 0 : i32
    return %arg0, %c0_i32, %arg1 : i32, i32, i32
  }
}

</mosaic_0001>

<llo_original>
// kernel: tpu_custom_call.1
$region0: #{tpu_custom_call.1}
  #allocation0 [shape = 'u32[]', space=smem, size = 0x4, offset = 0x4, fixed_abs, tag = 'smem constant byte address 0x4 - core index']
  #allocation1 [shape = 'u32[144,128]{1,0:T(1,128)}', space=vmem, size = 0x12000, scoped, tag = 'internal scratch']
  %s0 = inlined_call_operand.vmem [shape: bf16[2,18,18,4], index: 0, kind: input, shape index: {}]
  %s1 = inlined_call_operand.vmem [shape: bf16[8,36], index: 1, kind: input, shape index: {}]
  %s2 = inlined_call_operand.vmem [shape: f32[8,1], index: 2, kind: input, shape index: {}]
  %s3 = inlined_call_operand.hbm [shape: f32[2,8,256], index: 3, kind: output, shape index: {}]
  %s4 = sld [smem:[#allocation0]]
  $region45: #{tpu_custom_call.1} parent=0
    _
  %s6 = ssub.s32 1, %s4
  %s7 = scalar_select 0, %s6, %s4
  $region1: #{tpu_custom_call.1} parent=0
    #allocation2 [shape = 'u8[8192]{0}', space=vmem, size = 0x2000, scoped, tag = 'output window, operand 0']
    #allocation3 [shape = 's32[2]{0}', space=sflag, size = 0x8, scoped, tag = 'scoped memory for tpu_custom_call.1']
    %8 = vsyncpa [#allocation3], 0
    %s9 = scalar_lea.sflag [#allocation3], 1
    %10 = vsyncpa %s9, 0
    loop: start=0, step=1, limit=6
    $region2: #{tpu_custom_call.1} parent=1 // loop_pre_header
      _
    $region3: #{tpu_custom_call.1} parent=1 // loop_header
      %s12 = sphi 0, %s16
      %p13 = scmp.ge.s32.totalorder %s12, 6
      %s19 = sphi 0, %s31
      %s20 = sphi 0, %s27
      %s21 = sphi 0, %s19
      %s22 = sphi 0, %s20
      %s23 = sphi 0, %s21
      %s24 = sphi 0, %s22
      %s34 = sphi 0, %s36
      %s37 = sphi 0, %s34
      %s38 = sphi 0, %s37
      %s54 = sphi 0, %s38
      %s58 = sphi 0, %s58
      %s60 = sphi 0, %s58
      %s61 = sphi 0, %s60
      %s75 = sphi 0, %s61
      %s79 = sphi 0, %s79
      %s81 = sphi 0, %s79
      %s82 = sphi 0, %s81
      %s96 = sphi 0, %s82
      %s104 = sphi 0, %s106
      %s107 = sphi 0, %s104
      %s108 = sphi 0, %s107
      %s124 = sphi 0, %s108
    $region4: #{tpu_custom_call.1} parent=1 // loop_header_branch
      %15 = sbr.rel (%p13) target = $region8
    $region5: #{tpu_custom_call.1} parent=1 // loop_body
      %s17 = ssub.s32 %s12, 1
      %s18 = ssub.s32 %s12, 2
      %s25 = sadd.s32 1, %s20
      %p26 = scmp.ge.s32.totalorder %s25, 2
      %s27 = scalar_select %p26, 0, %s25
      %s28 = sadd.s32 1, %s19
      %s29 = scalar_select %p26, %s28, %s19
      %p30 = scmp.ge.s32.totalorder %s29, 2
      %s31 = scalar_select %p30, 0, %s29
      %s32 = ssub.s32 %s19, %s31
      %p33 = scmp.eq.s32.totalorder %s32, 0
      %s35 = sadd.s32 %s34, 1
      %s36 = scalar_select %p33, %s34, %s35
      %p39 = pneg %p33
      %p40 = scmp.eq.s32.totalorder %s12, 3
      %p41 = por %p39, %p40
      %p42 = scmp.ne.s32.totalorder %s34, %s37
      %p43 = scmp.eq.s32.totalorder %s12, 0
      %p44 = por %p42, %p43
      %p45 = scmp.ne.s32.totalorder %s34, %s37
      %p46 = scmp.eq.s32.totalorder %s17, 3
      %p47 = por %p45, %p46
      %p48 = scmp.ne.s32.totalorder %s37, %s38
      %p49 = scmp.eq.s32.totalorder %s17, 0
      %p50 = por %p48, %p49
      %p51 = scmp.ne.s32.totalorder %s37, %s38
      %p52 = scmp.eq.s32.totalorder %s18, 3
      %p53 = por %p51, %p52
      %p55 = scmp.ne.s32.totalorder %s38, %s54
      %p56 = scmp.eq.s32.totalorder %s18, 0
      %p57 = por %p55, %p56
      %s59 = sadd.s32 %s58, 1
      %p62 = scmp.eq.s32.totalorder %s12, 3
      %p63 = scmp.ne.s32.totalorder %s58, %s60
      %p64 = scmp.eq.s32.totalorder %s12, 0
      %p65 = por %p63, %p64
      %p66 = scmp.ne.s32.totalorder %s58, %s60
      %p67 = scmp.eq.s32.totalorder %s17, 3
      %p68 = por %p66, %p67
      %p69 = scmp.ne.s32.totalorder %s60, %s61
      %p70 = scmp.eq.s32.totalorder %s17, 0
      %p71 = por %p69, %p70
      %p72 = scmp.ne.s32.totalorder %s60, %s61
      %p73 = scmp.eq.s32.totalorder %s18, 3
      %p74 = por %p72, %p73
      %p76 = scmp.ne.s32.totalorder %s61, %s75
      %p77 = scmp.eq.s32.totalorder %s18, 0
      %p78 = por %p76, %p77
      %s80 = sadd.s32 %s79, 1
      %p83 = scmp.eq.s32.totalorder %s12, 3
      %p84 = scmp.ne.s32.totalorder %s79, %s81
      %p85 = scmp.eq.s32.totalorder %s12, 0
      %p86 = por %p84, %p85
      %p87 = scmp.ne.s32.totalorder %s79, %s81
      %p88 = scmp.eq.s32.totalorder %s17, 3
      %p89 = por %p87, %p88
      %p90 = scmp.ne.s32.totalorder %s81, %s82
      %p91 = scmp.eq.s32.totalorder %s17, 0
      %p92 = por %p90, %p91
      %p93 = scmp.ne.s32.totalorder %s81, %s82
      %p94 = scmp.eq.s32.totalorder %s18, 3
      %p95 = por %p93, %p94
      %p97 = scmp.ne.s32.totalorder %s82, %s96
      %p98 = scmp.eq.s32.totalorder %s18, 0
      %p99 = por %p97, %p98
      %s100 = ssub.s32 %s19, %s31
      %s101 = ssub.s32 %s20, %s27
      %s102 = sor.u32 %s100, %s101
      %p103 = scmp.eq.s32.totalorder %s102, 0
      %s105 = sadd.s32 %s104, 1
      %s106 = scalar_select %p103, %s104, %s105
      %p109 = pneg %p103
      %p110 = scmp.eq.s32.totalorder %s12, 3
      %p111 = por %p109, %p110
      %p112 = scmp.ne.s32.totalorder %s104, %s107
      %p113 = scmp.eq.s32.totalorder %s12, 0
      %p114 = por %p112, %p113
      %p115 = scmp.ne.s32.totalorder %s104, %s107
      %p116 = scmp.eq.s32.totalorder %s17, 3
      %p117 = por %p115, %p116
      %p118 = scmp.ne.s32.totalorder %s107, %s108
      %p119 = scmp.eq.s32.totalorder %s17, 0
      %p120 = por %p118, %p119
      %p121 = scmp.ne.s32.totalorder %s107, %s108
      %p122 = scmp.eq.s32.totalorder %s18, 3
      %p123 = por %p121, %p122
      %p125 = scmp.ne.s32.totalorder %s108, %s124
      %p126 = scmp.eq.s32.totalorder %s18, 0
      %p127 = por %p125, %p126
      %p128 = scmp.le.s32.totalorder 1, %s12
      %p129 = scmp.lt.s32.totalorder %s12, 5
      %p130 = pnand %p128, %p129
      %p131 = pneg %p130
      // Predicated region
      $region9: #{tpu_custom_call.1} parent=5 // pred_check
        _
      $region10: #{tpu_custom_call.1} parent=5 // pred_check_branch
        %133 = sbr.rel (%p130) target = $region12
      $region11: #{tpu_custom_call.1} parent=5 // pred_region
        %s134 = ssub.s32 %s12, 1
        // Predicated region
        $region13: #{tpu_custom_call.1} parent=11 // pred_check
          %p135 = pneg %p71
        $region14: #{tpu_custom_call.1} parent=11 // pred_check_branch
          %137 = sbr.rel (%p135) target = $region16
        $region15: #{tpu_custom_call.1} parent=11 // pred_region
          _
        $region16: #{tpu_custom_call.1} parent=11 // pred_fallthru
          _
        // Predicated region
        $region17: #{tpu_custom_call.1} parent=11 // pred_check
          %p138 = pneg %p92
        $region18: #{tpu_custom_call.1} parent=11 // pred_check_branch
          %140 = sbr.rel (%p138) target = $region20
        $region19: #{tpu_custom_call.1} parent=11 // pred_region
          _
        $region20: #{tpu_custom_call.1} parent=11 // pred_fallthru
          _
      $region12: #{tpu_custom_call.1} parent=5 // pred_fallthru
        _
      %p141 = scmp.lt.s32.totalorder %s12, 4
      // Predicated region
      $region21: #{tpu_custom_call.1} parent=5 // pred_check
        %p142 = pneg %p141
      $region22: #{tpu_custom_call.1} parent=5 // pred_check_branch
        %144 = sbr.rel (%p142) target = $region24
      $region23: #{tpu_custom_call.1} parent=5 // pred_region
        // Predicated region
        $region25: #{tpu_custom_call.1} parent=23 // pred_check
          %p145 = pneg %p44
        $region26: #{tpu_custom_call.1} parent=23 // pred_check_branch
          %147 = sbr.rel (%p145) target = $region28
        $region27: #{tpu_custom_call.1} parent=23 // pred_region
          %p148 = scmp.lt.s32.totalorder %s19, 1
          %s149 = scalar_select %p148, %s19, 1
          %s150 = smul.addr %s149, 54
          %s151 = smul.addr %s150, 4
          %s152 = scalar_lea.vmem %s0, %s151
        $region28: #{tpu_custom_call.1} parent=23 // pred_fallthru
          _
      $region24: #{tpu_custom_call.1} parent=5 // pred_fallthru
        _
      %p153 = scmp.le.s32.totalorder 1, %s12
      %p154 = scmp.lt.s32.totalorder %s12, 5
      %p155 = pnand %p153, %p154
      %p156 = pneg %p155
      // Predicated region
      $region29: #{tpu_custom_call.1} parent=5 // pred_check
        _
      $region30: #{tpu_custom_call.1} parent=5 // pred_check_branch
        %158 = sbr.rel (%p155) target = $region32
      $region31: #{tpu_custom_call.1} parent=5 // pred_region
        %s159 = ssub.s32 %s12, 1
        %p160 = scmp.lt.s32.totalorder %s21, 1
        %s161 = scalar_select %p160, %s21, 1
        %s162 = smul.addr %s161, 54
        %s163 = smul.addr %s162, 4
        %s164 = scalar_lea.vmem %s0, %s163
        %p165 = pneg %p50
        %p166 = pneg %p47
        %p167 = pneg %p71
        %p168 = pneg %p68
        %p169 = pneg %p92
        %p170 = pneg %p89
        %p171 = pneg %p120
        %p172 = pneg %p117
        %s173 = sand.u32 %s107, 1
        %s174 = scalar_lea.sflag [#allocation3], %s173
        %s175 = sand.u32 %s107, 1
        %s176 = smul.addr %s175, 8
        %s177 = scalar_lea.vmem [#allocation2], %s176
        %p178 = scmp.lt.s32.totalorder %s21, 1
        %s179 = scalar_select %p178, %s21, 1
        %s180 = smul.addr %s179, 54
        %s181 = smul.addr %s180, 4
        %s182 = scalar_lea.vmem %s0, %s181
        %s184 = smul.u32 %s22, 8
        %s185 = smul.u32 %s184, 3
        %s186 = smul.addr %s185, 4
        %s187 = scalar_lea.vmem %s182, %s186
        %v188 = vld [vmem:[%s187] sm:$0xf]
        %v189 = vld [vmem:[%s187 + $0x4] sm:$0xf]
        %v190 = vld [vmem:[%s187 + $0xc] sm:$0xf]
        %v191 = vld [vmem:[%s187 + $0x10] sm:$0xf]
        %v192 = vld [vmem:[%s187 + $0x18] sm:$0xf]
        %v193 = vld [vmem:[%s187 + $0x1c] sm:$0xf]
        %v194 = vld [vmem:[%s187 + $0x24] sm:$0xf]
        %v195 = vld [vmem:[%s187 + $0x28] sm:$0xf]
        %v196 = vld [vmem:[%s187 + $0x30] sm:$0xf]
        %v197 = vld [vmem:[%s187 + $0x34] sm:$0xf]
        %v198 = vld [vmem:[%s187 + $0x3c] sm:$0xf]
        %v199 = vld [vmem:[%s187 + $0x40] sm:$0xf]
        %v200 = vld [vmem:[%s187 + $0x48] sm:$0xf]
        %v201 = vld [vmem:[%s187 + $0x4c] sm:$0xf]
        %v202 = vld [vmem:[%s187 + $0x54] sm:$0xf]
        %v203 = vld [vmem:[%s187 + $0x58] sm:$0xf]
        %v204 = vld [vmem:[%s187 + $0x8] sm:$0x1]
        %v205 = vld [vmem:[%s187 + $0x14] sm:$0x1]
        %v206 = vld [vmem:[%s187 + $0x20] sm:$0x1]
        %v207 = vld [vmem:[%s187 + $0x2c] sm:$0x1]
        %v208 = vld [vmem:[%s187 + $0x38] sm:$0x1]
        %v209 = vld [vmem:[%s187 + $0x44] sm:$0x1]
        %v210 = vld [vmem:[%s187 + $0x50] sm:$0x1]
        %v211 = vld [vmem:[%s187 + $0x5c] sm:$0x1]
        %v212 = vld [vmem:[%s187] sm:$0xe]
        %v213 = vld [vmem:[%s187 + $0xc] sm:$0xe]
        %v214 = vld [vmem:[%s187 + $0x18] sm:$0xe]
        %v215 = vld [vmem:[%s187 + $0x24] sm:$0xe]
        %v216 = vld [vmem:[%s187 + $0x30] sm:$0xe]
        %v217 = vld [vmem:[%s187 + $0x3c] sm:$0xe]
        %v218 = vld [vmem:[%s187 + $0x48] sm:$0xe]
        %v219 = vld [vmem:[%s187 + $0x54] sm:$0xe]
        %s220 = sadd.s32 %s184, 1
        %s221 = smul.u32 %s220, 3
        %s222 = smul.addr %s221, 4
        %s223 = scalar_lea.vmem %s182, %s222
        %v224 = vld [vmem:[%s223] sm:$0xf]
        %v225 = vld [vmem:[%s223 + $0x4] sm:$0xf]
        %v226 = vld [vmem:[%s223 + $0xc] sm:$0xf]
        %v227 = vld [vmem:[%s223 + $0x10] sm:$0xf]
        %v228 = vld [vmem:[%s223 + $0x18] sm:$0xf]
        %v229 = vld [vmem:[%s223 + $0x1c] sm:$0xf]
        %v230 = vld [vmem:[%s223 + $0x24] sm:$0xf]
        %v231 = vld [vmem:[%s223 + $0x28] sm:$0xf]
        %v232 = vld [vmem:[%s223 + $0x30] sm:$0xf]
        %v233 = vld [vmem:[%s223 + $0x34] sm:$0xf]
        %v234 = vld [vmem:[%s223 + $0x3c] sm:$0xf]
        %v235 = vld [vmem:[%s223 + $0x40] sm:$0xf]
        %v236 = vld [vmem:[%s223 + $0x48] sm:$0xf]
        %v237 = vld [vmem:[%s223 + $0x4c] sm:$0xf]
        %v238 = vld [vmem:[%s223 + $0x54] sm:$0xf]
        %v239 = vld [vmem:[%s223 + $0x58] sm:$0xf]
        %v240 = vld [vmem:[%s223 + $0x8] sm:$0x1]
        %v241 = vld [vmem:[%s223 + $0x14] sm:$0x1]
        %v242 = vld [vmem:[%s223 + $0x20] sm:$0x1]
        %v243 = vld [vmem:[%s223 + $0x2c] sm:$0x1]
        %v244 = vld [vmem:[%s223 + $0x38] sm:$0x1]
        %v245 = vld [vmem:[%s223 + $0x44] sm:$0x1]
        %v246 = vld [vmem:[%s223 + $0x50] sm:$0x1]
        %v247 = vld [vmem:[%s223 + $0x5c] sm:$0x1]
        %v248 = vld [vmem:[%s223] sm:$0xe]
        %v249 = vld [vmem:[%s223 + $0xc] sm:$0xe]
        %v250 = vld [vmem:[%s223 + $0x18] sm:$0xe]
        %v251 = vld [vmem:[%s223 + $0x24] sm:$0xe]
        %v252 = vld [vmem:[%s223 + $0x30] sm:$0xe]
        %v253 = vld [vmem:[%s223 + $0x3c] sm:$0xe]
        %v254 = vld [vmem:[%s223 + $0x48] sm:$0xe]
        %v255 = vld [vmem:[%s223 + $0x54] sm:$0xe]
        %s256 = sadd.s32 %s184, 2
        %s257 = smul.u32 %s256, 3
        %s258 = smul.addr %s257, 4
        %s259 = scalar_lea.vmem %s182, %s258
        %v260 = vld [vmem:[%s259] sm:$0xf]
        %v261 = vld [vmem:[%s259 + $0x4] sm:$0xf]
        %v262 = vld [vmem:[%s259 + $0xc] sm:$0xf]
        %v263 = vld [vmem:[%s259 + $0x10] sm:$0xf]
        %v264 = vld [vmem:[%s259 + $0x18] sm:$0xf]
        %v265 = vld [vmem:[%s259 + $0x1c] sm:$0xf]
        %v266 = vld [vmem:[%s259 + $0x24] sm:$0xf]
        %v267 = vld [vmem:[%s259 + $0x28] sm:$0xf]
        %v268 = vld [vmem:[%s259 + $0x30] sm:$0xf]
        %v269 = vld [vmem:[%s259 + $0x34] sm:$0xf]
        %v270 = vld [vmem:[%s259 + $0x3c] sm:$0xf]
        %v271 = vld [vmem:[%s259 + $0x40] sm:$0xf]
        %v272 = vld [vmem:[%s259 + $0x48] sm:$0xf]
        %v273 = vld [vmem:[%s259 + $0x4c] sm:$0xf]
        %v274 = vld [vmem:[%s259 + $0x54] sm:$0xf]
        %v275 = vld [vmem:[%s259 + $0x58] sm:$0xf]
        %v276 = vld [vmem:[%s259 + $0x8] sm:$0x1]
        %v277 = vld [vmem:[%s259 + $0x14] sm:$0x1]
        %v278 = vld [vmem:[%s259 + $0x20] sm:$0x1]
        %v279 = vld [vmem:[%s259 + $0x2c] sm:$0x1]
        %v280 = vld [vmem:[%s259 + $0x38] sm:$0x1]
        %v281 = vld [vmem:[%s259 + $0x44] sm:$0x1]
        %v282 = vld [vmem:[%s259 + $0x50] sm:$0x1]
        %v283 = vld [vmem:[%s259 + $0x5c] sm:$0x1]
        %v284 = vld [vmem:[%s259] sm:$0xe]
        %v285 = vld [vmem:[%s259 + $0xc] sm:$0xe]
        %v286 = vld [vmem:[%s259 + $0x18] sm:$0xe]
        %v287 = vld [vmem:[%s259 + $0x24] sm:$0xe]
        %v288 = vld [vmem:[%s259 + $0x30] sm:$0xe]
        %v289 = vld [vmem:[%s259 + $0x3c] sm:$0xe]
        %v290 = vld [vmem:[%s259 + $0x48] sm:$0xe]
        %v291 = vld [vmem:[%s259 + $0x54] sm:$0xe]
        %v308 = vunpack.c.l.b16 %v188
        %v309 = vunpack.c.l.b16 %v189
        %v310 = vunpack.c.l.b16 %v190
        %v311 = vunpack.c.l.b16 %v191
        %v312 = vunpack.c.l.b16 %v192
        %v313 = vunpack.c.l.b16 %v193
        %v314 = vunpack.c.l.b16 %v194
        %v315 = vunpack.c.l.b16 %v195
        %v316 = vunpack.c.l.b16 %v196
        %v317 = vunpack.c.l.b16 %v197
        %v318 = vunpack.c.l.b16 %v198
        %v319 = vunpack.c.l.b16 %v199
        %v320 = vunpack.c.l.b16 %v200
        %v321 = vunpack.c.l.b16 %v201
        %v322 = vunpack.c.l.b16 %v202
        %v323 = vunpack.c.l.b16 %v203
        %v324 = vpack.c.b16 %v309, %v308
        %v325 = vpack.c.b16 %v311, %v310
        %v326 = vpack.c.b16 %v313, %v312
        %v327 = vpack.c.b16 %v315, %v314
        %v328 = vpack.c.b16 %v317, %v316
        %v329 = vpack.c.b16 %v319, %v318
        %v330 = vpack.c.b16 %v321, %v320
        %v331 = vpack.c.b16 %v323, %v322
        %v340 = vunpack.c.l.b16 %v204
        %v341 = vunpack.c.l.b16 %v205
        %v342 = vunpack.c.l.b16 %v206
        %v343 = vunpack.c.l.b16 %v207
        %v344 = vunpack.c.l.b16 %v208
        %v345 = vunpack.c.l.b16 %v209
        %v346 = vunpack.c.l.b16 %v210
        %v347 = vunpack.c.l.b16 %v211
        %v348 = vpack.c.b16 %v340, %v340
        %v349 = vpack.c.b16 %v341, %v341
        %v350 = vpack.c.b16 %v342, %v342
        %v351 = vpack.c.b16 %v343, %v343
        %v352 = vpack.c.b16 %v344, %v344
        %v353 = vpack.c.b16 %v345, %v345
        %v354 = vpack.c.b16 %v346, %v346
        %v355 = vpack.c.b16 %v347, %v347
        %vm356 = vsmask.f32 7424
        %v358 = vshrl.u32 %v324, 16
        %v360 = vshll.u32 %v324, 16
        %v362 = vrot.slane %v360, 1
        %v363 = vor.u32 %v358, %v362
        %v365 = vshll.u32 %v348, 16
        %v367 = vrot.slane %v365, 1
        %v368 = vsel %vm356, %v363, %v367
        %v370 = vshrl.u32 %v325, 16
        %v372 = vshll.u32 %v325, 16
        %v374 = vrot.slane %v372, 1
        %v375 = vor.u32 %v370, %v374
        %v377 = vshll.u32 %v349, 16
        %v379 = vrot.slane %v377, 1
        %v380 = vsel %vm356, %v375, %v379
        %v382 = vshrl.u32 %v326, 16
        %v384 = vshll.u32 %v326, 16
        %v386 = vrot.slane %v384, 1
        %v387 = vor.u32 %v382, %v386
        %v389 = vshll.u32 %v350, 16
        %v391 = vrot.slane %v389, 1
        %v392 = vsel %vm356, %v387, %v391
        %v394 = vshrl.u32 %v327, 16
        %v396 = vshll.u32 %v327, 16
        %v398 = vrot.slane %v396, 1
        %v399 = vor.u32 %v394, %v398
        %v401 = vshll.u32 %v351, 16
        %v403 = vrot.slane %v401, 1
        %v404 = vsel %vm356, %v399, %v403
        %v406 = vshrl.u32 %v328, 16
        %v408 = vshll.u32 %v328, 16
        %v410 = vrot.slane %v408, 1
        %v411 = vor.u32 %v406, %v410
        %v413 = vshll.u32 %v352, 16
        %v415 = vrot.slane %v413, 1
        %v416 = vsel %vm356, %v411, %v415
        %v418 = vshrl.u32 %v329, 16
        %v420 = vshll.u32 %v329, 16
        %v422 = vrot.slane %v420, 1
        %v423 = vor.u32 %v418, %v422
        %v425 = vshll.u32 %v353, 16
        %v427 = vrot.slane %v425, 1
        %v428 = vsel %vm356, %v423, %v427
        %v430 = vshrl.u32 %v330, 16
        %v432 = vshll.u32 %v330, 16
        %v434 = vrot.slane %v432, 1
        %v435 = vor.u32 %v430, %v434
        %v437 = vshll.u32 %v354, 16
        %v439 = vrot.slane %v437, 1
        %v440 = vsel %vm356, %v435, %v439
        %v442 = vshrl.u32 %v331, 16
        %v444 = vshll.u32 %v331, 16
        %v446 = vrot.slane %v444, 1
        %v447 = vor.u32 %v442, %v446
        %v449 = vshll.u32 %v355, 16
        %v451 = vrot.slane %v449, 1
        %v452 = vsel %vm356, %v447, %v451
        %453 = vrot.lane.b32.xlu0 %v368, 4
        %v454 = vpop.permute.xlu0 %453
        %455 = vrot.lane.b32.xlu0 %v380, 4
        %v456 = vpop.permute.xlu0 %455
        %457 = vrot.lane.b32.xlu0 %v392, 4
        %v458 = vpop.permute.xlu0 %457
        %459 = vrot.lane.b32.xlu0 %v404, 4
        %v460 = vpop.permute.xlu0 %459
        %461 = vrot.lane.b32.xlu0 %v416, 4
        %v462 = vpop.permute.xlu0 %461
        %463 = vrot.lane.b32.xlu0 %v428, 4
        %v464 = vpop.permute.xlu0 %463
        %465 = vrot.lane.b32.xlu0 %v440, 4
        %v466 = vpop.permute.xlu0 %465
        %467 = vrot.lane.b32.xlu0 %v452, 4
        %v468 = vpop.permute.xlu0 %467
        %v477 = vunpack.c.l.b16 %v212
        %v478 = vunpack.c.l.b16 %v213
        %v479 = vunpack.c.l.b16 %v214
        %v480 = vunpack.c.l.b16 %v215
        %v481 = vunpack.c.l.b16 %v216
        %v482 = vunpack.c.l.b16 %v217
        %v483 = vunpack.c.l.b16 %v218
        %v484 = vunpack.c.l.b16 %v219
        %v485 = vpack.c.b16 %v309, %v477
        %v486 = vpack.c.b16 %v311, %v478
        %v487 = vpack.c.b16 %v313, %v479
        %v488 = vpack.c.b16 %v315, %v480
        %v489 = vpack.c.b16 %v317, %v481
        %v490 = vpack.c.b16 %v319, %v482
        %v491 = vpack.c.b16 %v321, %v483
        %v492 = vpack.c.b16 %v323, %v484
        %vm493 = vcmask 1046528
        %v494 = vrot.slane %v485, 1
        %v495 = vrot.slane %v348, 1
        %v496 = vsel %vm493, %v494, %v495
        %v497 = vrot.slane %v486, 1
        %v498 = vrot.slane %v349, 1
        %v499 = vsel %vm493, %v497, %v498
        %v500 = vrot.slane %v487, 1
        %v501 = vrot.slane %v350, 1
        %v502 = vsel %vm493, %v500, %v501
        %v503 = vrot.slane %v488, 1
        %v504 = vrot.slane %v351, 1
        %v505 = vsel %vm493, %v503, %v504
        %v506 = vrot.slane %v489, 1
        %v507 = vrot.slane %v352, 1
        %v508 = vsel %vm493, %v506, %v507
        %v509 = vrot.slane %v490, 1
        %v510 = vrot.slane %v353, 1
        %v511 = vsel %vm493, %v509, %v510
        %v512 = vrot.slane %v491, 1
        %v513 = vrot.slane %v354, 1
        %v514 = vsel %vm493, %v512, %v513
        %v515 = vrot.slane %v492, 1
        %v516 = vrot.slane %v355, 1
        %v517 = vsel %vm493, %v515, %v516
        %518 = vrot.lane.b32.xlu0 %v496, 8
        %v519 = vpop.permute.xlu0 %518
        %520 = vrot.lane.b32.xlu0 %v499, 8
        %v521 = vpop.permute.xlu0 %520
        %522 = vrot.lane.b32.xlu0 %v502, 8
        %v523 = vpop.permute.xlu0 %522
        %524 = vrot.lane.b32.xlu0 %v505, 8
        %v525 = vpop.permute.xlu0 %524
        %526 = vrot.lane.b32.xlu0 %v508, 8
        %v527 = vpop.permute.xlu0 %526
        %528 = vrot.lane.b32.xlu0 %v511, 8
        %v529 = vpop.permute.xlu0 %528
        %530 = vrot.lane.b32.xlu0 %v514, 8
        %v531 = vpop.permute.xlu0 %530
        %532 = vrot.lane.b32.xlu0 %v517, 8
        %v533 = vpop.permute.xlu0 %532
        %v550 = vunpack.c.l.b16 %v224
        %v551 = vunpack.c.l.b16 %v225
        %v552 = vunpack.c.l.b16 %v226
        %v553 = vunpack.c.l.b16 %v227
        %v554 = vunpack.c.l.b16 %v228
        %v555 = vunpack.c.l.b16 %v229
        %v556 = vunpack.c.l.b16 %v230
        %v557 = vunpack.c.l.b16 %v231
        %v558 = vunpack.c.l.b16 %v232
        %v559 = vunpack.c.l.b16 %v233
        %v560 = vunpack.c.l.b16 %v234
        %v561 = vunpack.c.l.b16 %v235
        %v562 = vunpack.c.l.b16 %v236
        %v563 = vunpack.c.l.b16 %v237
        %v564 = vunpack.c.l.b16 %v238
        %v565 = vunpack.c.l.b16 %v239
        %v566 = vpack.c.b16 %v551, %v550
        %v567 = vpack.c.b16 %v553, %v552
        %v568 = vpack.c.b16 %v555, %v554
        %v569 = vpack.c.b16 %v557, %v556
        %v570 = vpack.c.b16 %v559, %v558
        %v571 = vpack.c.b16 %v561, %v560
        %v572 = vpack.c.b16 %v563, %v562
        %v573 = vpack.c.b16 %v565, %v564
        %574 = vrot.lane.b32.xlu0 %v566, 12
        %v575 = vpop.permute.xlu0 %574
        %576 = vrot.lane.b32.xlu0 %v567, 12
        %v577 = vpop.permute.xlu0 %576
        %578 = vrot.lane.b32.xlu0 %v568, 12
        %v579 = vpop.permute.xlu0 %578
        %580 = vrot.lane.b32.xlu0 %v569, 12
        %v581 = vpop.permute.xlu0 %580
        %582 = vrot.lane.b32.xlu0 %v570, 12
        %v583 = vpop.permute.xlu0 %582
        %584 = vrot.lane.b32.xlu0 %v571, 12
        %v585 = vpop.permute.xlu0 %584
        %586 = vrot.lane.b32.xlu0 %v572, 12
        %v587 = vpop.permute.xlu0 %586
        %588 = vrot.lane.b32.xlu0 %v573, 12
        %v589 = vpop.permute.xlu0 %588
        %v598 = vunpack.c.l.b16 %v240
        %v599 = vunpack.c.l.b16 %v241
        %v600 = vunpack.c.l.b16 %v242
        %v601 = vunpack.c.l.b16 %v243
        %v602 = vunpack.c.l.b16 %v244
        %v603 = vunpack.c.l.b16 %v245
        %v604 = vunpack.c.l.b16 %v246
        %v605 = vunpack.c.l.b16 %v247
        %v606 = vpack.c.b16 %v598, %v598
        %v607 = vpack.c.b16 %v599, %v599
        %v608 = vpack.c.b16 %v600, %v600
        %v609 = vpack.c.b16 %v601, %v601
        %v610 = vpack.c.b16 %v602, %v602
        %v611 = vpack.c.b16 %v603, %v603
        %v612 = vpack.c.b16 %v604, %v604
        %v613 = vpack.c.b16 %v605, %v605
        %v615 = vshrl.u32 %v566, 16
        %v617 = vshll.u32 %v566, 16
        %v619 = vrot.slane %v617, 1
        %v620 = vor.u32 %v615, %v619
        %v622 = vshll.u32 %v606, 16
        %v624 = vrot.slane %v622, 1
        %v625 = vsel %vm356, %v620, %v624
        %v627 = vshrl.u32 %v567, 16
        %v629 = vshll.u32 %v567, 16
        %v631 = vrot.slane %v629, 1
        %v632 = vor.u32 %v627, %v631
        %v634 = vshll.u32 %v607, 16
        %v636 = vrot.slane %v634, 1
        %v637 = vsel %vm356, %v632, %v636
        %v639 = vshrl.u32 %v568, 16
        %v641 = vshll.u32 %v568, 16
        %v643 = vrot.slane %v641, 1
        %v644 = vor.u32 %v639, %v643
        %v646 = vshll.u32 %v608, 16
        %v648 = vrot.slane %v646, 1
        %v649 = vsel %vm356, %v644, %v648
        %v651 = vshrl.u32 %v569, 16
        %v653 = vshll.u32 %v569, 16
        %v655 = vrot.slane %v653, 1
        %v656 = vor.u32 %v651, %v655
        %v658 = vshll.u32 %v609, 16
        %v660 = vrot.slane %v658, 1
        %v661 = vsel %vm356, %v656, %v660
        %v663 = vshrl.u32 %v570, 16
        %v665 = vshll.u32 %v570, 16
        %v667 = vrot.slane %v665, 1
        %v668 = vor.u32 %v663, %v667
        %v670 = vshll.u32 %v610, 16
        %v672 = vrot.slane %v670, 1
        %v673 = vsel %vm356, %v668, %v672
        %v675 = vshrl.u32 %v571, 16
        %v677 = vshll.u32 %v571, 16
        %v679 = vrot.slane %v677, 1
        %v680 = vor.u32 %v675, %v679
        %v682 = vshll.u32 %v611, 16
        %v684 = vrot.slane %v682, 1
        %v685 = vsel %vm356, %v680, %v684
        %v687 = vshrl.u32 %v572, 16
        %v689 = vshll.u32 %v572, 16
        %v691 = vrot.slane %v689, 1
        %v692 = vor.u32 %v687, %v691
        %v694 = vshll.u32 %v612, 16
        %v696 = vrot.slane %v694, 1
        %v697 = vsel %vm356, %v692, %v696
        %v699 = vshrl.u32 %v573, 16
        %v701 = vshll.u32 %v573, 16
        %v703 = vrot.slane %v701, 1
        %v704 = vor.u32 %v699, %v703
        %v706 = vshll.u32 %v613, 16
        %v708 = vrot.slane %v706, 1
        %v709 = vsel %vm356, %v704, %v708
        %710 = vrot.lane.b32.xlu0 %v625, 16
        %v711 = vpop.permute.xlu0 %710
        %712 = vrot.lane.b32.xlu0 %v637, 16
        %v713 = vpop.permute.xlu0 %712
        %714 = vrot.lane.b32.xlu0 %v649, 16
        %v715 = vpop.permute.xlu0 %714
        %716 = vrot.lane.b32.xlu0 %v661, 16
        %v717 = vpop.permute.xlu0 %716
        %718 = vrot.lane.b32.xlu0 %v673, 16
        %v719 = vpop.permute.xlu0 %718
        %720 = vrot.lane.b32.xlu0 %v685, 16
        %v721 = vpop.permute.xlu0 %720
        %722 = vrot.lane.b32.xlu0 %v697, 16
        %v723 = vpop.permute.xlu0 %722
        %724 = vrot.lane.b32.xlu0 %v709, 16
        %v725 = vpop.permute.xlu0 %724
        %v734 = vunpack.c.l.b16 %v248
        %v735 = vunpack.c.l.b16 %v249
        %v736 = vunpack.c.l.b16 %v250
        %v737 = vunpack.c.l.b16 %v251
        %v738 = vunpack.c.l.b16 %v252
        %v739 = vunpack.c.l.b16 %v253
        %v740 = vunpack.c.l.b16 %v254
        %v741 = vunpack.c.l.b16 %v255
        %v742 = vpack.c.b16 %v551, %v734
        %v743 = vpack.c.b16 %v553, %v735
        %v744 = vpack.c.b16 %v555, %v736
        %v745 = vpack.c.b16 %v557, %v737
        %v746 = vpack.c.b16 %v559, %v738
        %v747 = vpack.c.b16 %v561, %v739
        %v748 = vpack.c.b16 %v563, %v740
        %v749 = vpack.c.b16 %v565, %v741
        %v750 = vrot.slane %v742, 1
        %v751 = vrot.slane %v606, 1
        %v752 = vsel %vm493, %v750, %v751
        %v753 = vrot.slane %v743, 1
        %v754 = vrot.slane %v607, 1
        %v755 = vsel %vm493, %v753, %v754
        %v756 = vrot.slane %v744, 1
        %v757 = vrot.slane %v608, 1
        %v758 = vsel %vm493, %v756, %v757
        %v759 = vrot.slane %v745, 1
        %v760 = vrot.slane %v609, 1
        %v761 = vsel %vm493, %v759, %v760
        %v762 = vrot.slane %v746, 1
        %v763 = vrot.slane %v610, 1
        %v764 = vsel %vm493, %v762, %v763
        %v765 = vrot.slane %v747, 1
        %v766 = vrot.slane %v611, 1
        %v767 = vsel %vm493, %v765, %v766
        %v768 = vrot.slane %v748, 1
        %v769 = vrot.slane %v612, 1
        %v770 = vsel %vm493, %v768, %v769
        %v771 = vrot.slane %v749, 1
        %v772 = vrot.slane %v613, 1
        %v773 = vsel %vm493, %v771, %v772
        %774 = vrot.lane.b32.xlu0 %v752, 20
        %v775 = vpop.permute.xlu0 %774
        %776 = vrot.lane.b32.xlu0 %v755, 20
        %v777 = vpop.permute.xlu0 %776
        %778 = vrot.lane.b32.xlu0 %v758, 20
        %v779 = vpop.permute.xlu0 %778
        %780 = vrot.lane.b32.xlu0 %v761, 20
        %v781 = vpop.permute.xlu0 %780
        %782 = vrot.lane.b32.xlu0 %v764, 20
        %v783 = vpop.permute.xlu0 %782
        %784 = vrot.lane.b32.xlu0 %v767, 20
        %v785 = vpop.permute.xlu0 %784
        %786 = vrot.lane.b32.xlu0 %v770, 20
        %v787 = vpop.permute.xlu0 %786
        %788 = vrot.lane.b32.xlu0 %v773, 20
        %v789 = vpop.permute.xlu0 %788
        %v806 = vunpack.c.l.b16 %v260
        %v807 = vunpack.c.l.b16 %v261
        %v808 = vunpack.c.l.b16 %v262
        %v809 = vunpack.c.l.b16 %v263
        %v810 = vunpack.c.l.b16 %v264
        %v811 = vunpack.c.l.b16 %v265
        %v812 = vunpack.c.l.b16 %v266
        %v813 = vunpack.c.l.b16 %v267
        %v814 = vunpack.c.l.b16 %v268
        %v815 = vunpack.c.l.b16 %v269
        %v816 = vunpack.c.l.b16 %v270
        %v817 = vunpack.c.l.b16 %v271
        %v818 = vunpack.c.l.b16 %v272
        %v819 = vunpack.c.l.b16 %v273
        %v820 = vunpack.c.l.b16 %v274
        %v821 = vunpack.c.l.b16 %v275
        %v822 = vpack.c.b16 %v807, %v806
        %v823 = vpack.c.b16 %v809, %v808
        %v824 = vpack.c.b16 %v811, %v810
        %v825 = vpack.c.b16 %v813, %v812
        %v826 = vpack.c.b16 %v815, %v814
        %v827 = vpack.c.b16 %v817, %v816
        %v828 = vpack.c.b16 %v819, %v818
        %v829 = vpack.c.b16 %v821, %v820
        %830 = vrot.lane.b32.xlu0 %v822, 24
        %v831 = vpop.permute.xlu0 %830
        %832 = vrot.lane.b32.xlu0 %v823, 24
        %v833 = vpop.permute.xlu0 %832
        %834 = vrot.lane.b32.xlu0 %v824, 24
        %v835 = vpop.permute.xlu0 %834
        %836 = vrot.lane.b32.xlu0 %v825, 24
        %v837 = vpop.permute.xlu0 %836
        %838 = vrot.lane.b32.xlu0 %v826, 24
        %v839 = vpop.permute.xlu0 %838
        %840 = vrot.lane.b32.xlu0 %v827, 24
        %v841 = vpop.permute.xlu0 %840
        %842 = vrot.lane.b32.xlu0 %v828, 24
        %v843 = vpop.permute.xlu0 %842
        %844 = vrot.lane.b32.xlu0 %v829, 24
        %v845 = vpop.permute.xlu0 %844
        %v854 = vunpack.c.l.b16 %v276
        %v855 = vunpack.c.l.b16 %v277
        %v856 = vunpack.c.l.b16 %v278
        %v857 = vunpack.c.l.b16 %v279
        %v858 = vunpack.c.l.b16 %v280
        %v859 = vunpack.c.l.b16 %v281
        %v860 = vunpack.c.l.b16 %v282
        %v861 = vunpack.c.l.b16 %v283
        %v862 = vpack.c.b16 %v854, %v854
        %v863 = vpack.c.b16 %v855, %v855
        %v864 = vpack.c.b16 %v856, %v856
        %v865 = vpack.c.b16 %v857, %v857
        %v866 = vpack.c.b16 %v858, %v858
        %v867 = vpack.c.b16 %v859, %v859
        %v868 = vpack.c.b16 %v860, %v860
        %v869 = vpack.c.b16 %v861, %v861
        %v871 = vshrl.u32 %v822, 16
        %v873 = vshll.u32 %v822, 16
        %v875 = vrot.slane %v873, 1
        %v876 = vor.u32 %v871, %v875
        %v878 = vshll.u32 %v862, 16
        %v880 = vrot.slane %v878, 1
        %v881 = vsel %vm356, %v876, %v880
        %v883 = vshrl.u32 %v823, 16
        %v885 = vshll.u32 %v823, 16
        %v887 = vrot.slane %v885, 1
        %v888 = vor.u32 %v883, %v887
        %v890 = vshll.u32 %v863, 16
        %v892 = vrot.slane %v890, 1
        %v893 = vsel %vm356, %v888, %v892
        %v895 = vshrl.u32 %v824, 16
        %v897 = vshll.u32 %v824, 16
        %v899 = vrot.slane %v897, 1
        %v900 = vor.u32 %v895, %v899
        %v902 = vshll.u32 %v864, 16
        %v904 = vrot.slane %v902, 1
        %v905 = vsel %vm356, %v900, %v904
        %v907 = vshrl.u32 %v825, 16
        %v909 = vshll.u32 %v825, 16
        %v911 = vrot.slane %v909, 1
        %v912 = vor.u32 %v907, %v911
        %v914 = vshll.u32 %v865, 16
        %v916 = vrot.slane %v914, 1
        %v917 = vsel %vm356, %v912, %v916
        %v919 = vshrl.u32 %v826, 16
        %v921 = vshll.u32 %v826, 16
        %v923 = vrot.slane %v921, 1
        %v924 = vor.u32 %v919, %v923
        %v926 = vshll.u32 %v866, 16
        %v928 = vrot.slane %v926, 1
        %v929 = vsel %vm356, %v924, %v928
        %v931 = vshrl.u32 %v827, 16
        %v933 = vshll.u32 %v827, 16
        %v935 = vrot.slane %v933, 1
        %v936 = vor.u32 %v931, %v935
        %v938 = vshll.u32 %v867, 16
        %v940 = vrot.slane %v938, 1
        %v941 = vsel %vm356, %v936, %v940
        %v943 = vshrl.u32 %v828, 16
        %v945 = vshll.u32 %v828, 16
        %v947 = vrot.slane %v945, 1
        %v948 = vor.u32 %v943, %v947
        %v950 = vshll.u32 %v868, 16
        %v952 = vrot.slane %v950, 1
        %v953 = vsel %vm356, %v948, %v952
        %v955 = vshrl.u32 %v829, 16
        %v957 = vshll.u32 %v829, 16
        %v959 = vrot.slane %v957, 1
        %v960 = vor.u32 %v955, %v959
        %v962 = vshll.u32 %v869, 16
        %v964 = vrot.slane %v962, 1
        %v965 = vsel %vm356, %v960, %v964
        %966 = vrot.lane.b32.xlu0 %v881, 28
        %v967 = vpop.permute.xlu0 %966
        %968 = vrot.lane.b32.xlu0 %v893, 28
        %v969 = vpop.permute.xlu0 %968
        %970 = vrot.lane.b32.xlu0 %v905, 28
        %v971 = vpop.permute.xlu0 %970
        %972 = vrot.lane.b32.xlu0 %v917, 28
        %v973 = vpop.permute.xlu0 %972
        %974 = vrot.lane.b32.xlu0 %v929, 28
        %v975 = vpop.permute.xlu0 %974
        %976 = vrot.lane.b32.xlu0 %v941, 28
        %v977 = vpop.permute.xlu0 %976
        %978 = vrot.lane.b32.xlu0 %v953, 28
        %v979 = vpop.permute.xlu0 %978
        %980 = vrot.lane.b32.xlu0 %v965, 28
        %v981 = vpop.permute.xlu0 %980
        %v990 = vunpack.c.l.b16 %v284
        %v991 = vunpack.c.l.b16 %v285
        %v992 = vunpack.c.l.b16 %v286
        %v993 = vunpack.c.l.b16 %v287
        %v994 = vunpack.c.l.b16 %v288
        %v995 = vunpack.c.l.b16 %v289
        %v996 = vunpack.c.l.b16 %v290
        %v997 = vunpack.c.l.b16 %v291
        %v998 = vpack.c.b16 %v807, %v990
        %v999 = vpack.c.b16 %v809, %v991
        %v1000 = vpack.c.b16 %v811, %v992
        %v1001 = vpack.c.b16 %v813, %v993
        %v1002 = vpack.c.b16 %v815, %v994
        %v1003 = vpack.c.b16 %v817, %v995
        %v1004 = vpack.c.b16 %v819, %v996
        %v1005 = vpack.c.b16 %v821, %v997
        %v1006 = vrot.slane %v998, 1
        %v1007 = vrot.slane %v862, 1
        %v1008 = vsel %vm493, %v1006, %v1007
        %v1009 = vrot.slane %v999, 1
        %v1010 = vrot.slane %v863, 1
        %v1011 = vsel %vm493, %v1009, %v1010
        %v1012 = vrot.slane %v1000, 1
        %v1013 = vrot.slane %v864, 1
        %v1014 = vsel %vm493, %v1012, %v1013
        %v1015 = vrot.slane %v1001, 1
        %v1016 = vrot.slane %v865, 1
        %v1017 = vsel %vm493, %v1015, %v1016
        %v1018 = vrot.slane %v1002, 1
        %v1019 = vrot.slane %v866, 1
        %v1020 = vsel %vm493, %v1018, %v1019
        %v1021 = vrot.slane %v1003, 1
        %v1022 = vrot.slane %v867, 1
        %v1023 = vsel %vm493, %v1021, %v1022
        %v1024 = vrot.slane %v1004, 1
        %v1025 = vrot.slane %v868, 1
        %v1026 = vsel %vm493, %v1024, %v1025
        %v1027 = vrot.slane %v1005, 1
        %v1028 = vrot.slane %v869, 1
        %v1029 = vsel %vm493, %v1027, %v1028
        %1030 = vrot.lane.b32.xlu0 %v1008, 32
        %v1031 = vpop.permute.xlu0 %1030
        %1032 = vrot.lane.b32.xlu0 %v1011, 32
        %v1033 = vpop.permute.xlu0 %1032
        %1034 = vrot.lane.b32.xlu0 %v1014, 32
        %v1035 = vpop.permute.xlu0 %1034
        %1036 = vrot.lane.b32.xlu0 %v1017, 32
        %v1037 = vpop.permute.xlu0 %1036
        %1038 = vrot.lane.b32.xlu0 %v1020, 32
        %v1039 = vpop.permute.xlu0 %1038
        %1040 = vrot.lane.b32.xlu0 %v1023, 32
        %v1041 = vpop.permute.xlu0 %1040
        %1042 = vrot.lane.b32.xlu0 %v1026, 32
        %v1043 = vpop.permute.xlu0 %1042
        %1044 = vrot.lane.b32.xlu0 %v1029, 32
        %v1045 = vpop.permute.xlu0 %1044
        %vm1046 = vcmask 31744
        %v1048 = vsel %vm1046, %v324, %v454
        %v1050 = vsel %vm1046, %v325, %v456
        %v1052 = vsel %vm1046, %v326, %v458
        %v1054 = vsel %vm1046, %v327, %v460
        %v1056 = vsel %vm1046, %v328, %v462
        %v1058 = vsel %vm1046, %v329, %v464
        %v1060 = vsel %vm1046, %v330, %v466
        %v1062 = vsel %vm1046, %v331, %v468
        %vm1063 = vcmask 64512
        %v1065 = vsel %vm1063, %v1048, %v519
        %v1067 = vsel %vm1063, %v1050, %v521
        %v1069 = vsel %vm1063, %v1052, %v523
        %v1071 = vsel %vm1063, %v1054, %v525
        %v1073 = vsel %vm1063, %v1056, %v527
        %v1075 = vsel %vm1063, %v1058, %v529
        %v1077 = vsel %vm1063, %v1060, %v531
        %v1079 = vsel %vm1063, %v1062, %v533
        %vm1080 = vcmask 97280
        %v1082 = vsel %vm1080, %v1065, %v575
        %v1084 = vsel %vm1080, %v1067, %v577
        %v1086 = vsel %vm1080, %v1069, %v579
        %v1088 = vsel %vm1080, %v1071, %v581
        %v1090 = vsel %vm1080, %v1073, %v583
        %v1092 = vsel %vm1080, %v1075, %v585
        %v1094 = vsel %vm1080, %v1077, %v587
        %v1096 = vsel %vm1080, %v1079, %v589
        %vm1097 = vcmask 130048
        %v1099 = vsel %vm1097, %v1082, %v711
        %v1101 = vsel %vm1097, %v1084, %v713
        %v1103 = vsel %vm1097, %v1086, %v715
        %v1105 = vsel %vm1097, %v1088, %v717
        %v1107 = vsel %vm1097, %v1090, %v719
        %v1109 = vsel %vm1097, %v1092, %v721
        %v1111 = vsel %vm1097, %v1094, %v723
        %v1113 = vsel %vm1097, %v1096, %v725
        %vm1114 = vcmask 162816
        %v1116 = vsel %vm1114, %v1099, %v775
        %v1118 = vsel %vm1114, %v1101, %v777
        %v1120 = vsel %vm1114, %v1103, %v779
        %v1122 = vsel %vm1114, %v1105, %v781
        %v1124 = vsel %vm1114, %v1107, %v783
        %v1126 = vsel %vm1114, %v1109, %v785
        %v1128 = vsel %vm1114, %v1111, %v787
        %v1130 = vsel %vm1114, %v1113, %v789
        %vm1131 = vcmask 195584
        %v1133 = vsel %vm1131, %v1116, %v831
        %v1135 = vsel %vm1131, %v1118, %v833
        %v1137 = vsel %vm1131, %v1120, %v835
        %v1139 = vsel %vm1131, %v1122, %v837
        %v1141 = vsel %vm1131, %v1124, %v839
        %v1143 = vsel %vm1131, %v1126, %v841
        %v1145 = vsel %vm1131, %v1128, %v843
        %v1147 = vsel %vm1131, %v1130, %v845
        %vm1148 = vcmask 228352
        %v1150 = vsel %vm1148, %v1133, %v967
        %v1152 = vsel %vm1148, %v1135, %v969
        %v1154 = vsel %vm1148, %v1137, %v971
        %v1156 = vsel %vm1148, %v1139, %v973
        %v1158 = vsel %vm1148, %v1141, %v975
        %v1160 = vsel %vm1148, %v1143, %v977
        %v1162 = vsel %vm1148, %v1145, %v979
        %v1164 = vsel %vm1148, %v1147, %v981
        %vm1165 = vcmask 261120
        %v1167 = vsel %vm1165, %v1150, %v1031
        %v1169 = vsel %vm1165, %v1152, %v1033
        %v1171 = vsel %vm1165, %v1154, %v1035
        %v1173 = vsel %vm1165, %v1156, %v1037
        %v1175 = vsel %vm1165, %v1158, %v1039
        %v1177 = vsel %vm1165, %v1160, %v1041
        %v1179 = vsel %vm1165, %v1162, %v1043
        %v1181 = vsel %vm1165, %v1164, %v1045
        %v1182 = vld [vmem:[%s1] sm:$0xf]
        %v1183 = vld [vmem:[%s2] sm:$0xff]
        %1185 = vset.pattern.permute.xlu0 0
        %1186 = vperm.xlu0 %1185, %v1183
        %v1187 = vpop.permute.xlu0 %1186
        %vm1189 = vcmask 293888
        %v1191 = vsel %vm1189, %v1182, 0
        %v1193 = vsel %vm1189, %v1167, 0
        %v1195 = vsel %vm1189, %v1169, 0
        %v1197 = vsel %vm1189, %v1171, 0
        %v1199 = vsel %vm1189, %v1173, 0
        %v1201 = vsel %vm1189, %v1175, 0
        %v1203 = vsel %vm1189, %v1177, 0
        %v1205 = vsel %vm1189, %v1179, 0
        %v1207 = vsel %vm1189, %v1181, 0
        %1209 = vmatprep.subr.bf16.mxu0 0
        %1210 = vmatpush1.bf16.xpose.msra.mxu0 %v1207
        %1211 = vmatprep.subr.bf16.mxu0 0
        %1212 = vmatpush1.bf16.xpose.msra.mxu0 %v1205
        %1213 = vmatprep.subr.bf16.mxu0 0
        %1214 = vmatpush1.bf16.xpose.msra.mxu0 %v1203
        %1215 = vmatprep.subr.bf16.mxu0 0
        %1216 = vmatpush1.bf16.xpose.msra.mxu0 %v1201
        %1217 = vmatprep.subr.bf16.mxu0 0
        %1218 = vmatpush1.bf16.xpose.msra.mxu0 %v1199
        %1219 = vmatprep.subr.bf16.mxu0 0
        %1220 = vmatpush1.bf16.xpose.msra.mxu0 %v1197
        %1221 = vmatprep.subr.bf16.mxu0 0
        %1222 = vmatpush1.bf16.xpose.msra.mxu0 %v1195
        %1223 = vmatprep.subr.bf16.mxu0 0
        %1224 = vmatpush1.bf16.xpose.msra.mxu0 %v1193
        %1225 = vmatprep.subr.bf16.mxu0 0
        %1226 = vmatpush2.bf16.xpose.msra.mxu0 0
        %1227 = vmatprep.subr.bf16.mxu0 0
        %1228 = vmatpush2.bf16.xpose.msra.mxu0 0
        %1229 = vmatprep.subr.bf16.mxu0 0
        %1230 = vmatpush2.bf16.xpose.msra.mxu0 0
        %1231 = vmatprep.subr.bf16.mxu0 0
        %1232 = vmatpush2.bf16.xpose.msra.mxu0 0
        %1233 = vmatprep.subr.bf16.mxu0 0
        %1234 = vmatpush2.bf16.xpose.msra.mxu0 0
        %1235 = vmatprep.subr.bf16.mxu0 0
        %1236 = vmatpush2.bf16.xpose.msra.mxu0 0
        %1237 = vmatprep.subr.bf16.mxu0 0
        %1238 = vmatpush2.bf16.xpose.msra.mxu0 0
        %1239 = vmatprep.subr.bf16.mxu0 0
        %1240 = vmatpush2.bf16.xpose.msra.mxu0 0
        %1241 = vmatprep.mubr.bf16.mxu0 0
        %1242 = vmatmul.mubr.bf16.gmra.mxu0 %v1191
        %v1243 = vpop.f32.mrf.mxu0
        %v1244 = vadd.f32 %v1187, %v1243
        %v1245 = vpop.f32.mrf.mxu0
        %v1246 = vpop.f32.mrf.mxu0
        %v1247 = vpop.f32.mrf.mxu0
        %1248 = vdwg.mxu0
        %v1249 = vmax.f32 %v1244, 0.0
        %1250 = vst [vmem:[%s177] sm:$0xff] %v1249
        %s1251 = sand.u32 %s107, 1
        %s1252 = scalar_lea.sflag [#allocation3], %s1251
        %s1253 = sand.u32 %s107, 1
        %s1254 = smul.addr %s1253, 8
        %s1255 = scalar_lea.vmem [#allocation2], %s1254
        // Predicated region
        $region33: #{tpu_custom_call.1} parent=31 // pred_check
          %p1256 = pneg %p117
        $region34: #{tpu_custom_call.1} parent=31 // pred_check_branch
          %1258 = sbr.rel (%p1256) target = $region36
        $region35: #{tpu_custom_call.1} parent=31 // pred_region
          %s1260 = ssub.s32 128, 128
          %1261 = vsyncadd %s1252, %s1260
          %s1262 = smul.addr %s21, 2
          %s1263 = sadd.s32 %s22, %s1262
          %s1264 = smul.addr %s1263, 128
          %s1265 = scalar_lea.hbm %s3, %s1264
          %s1267 = sshll.u32 %s1255, 4
          %s1268 = int_to_ptr.vmem [resolvable:$true] %s1267
          %1270 = dma.vmem_to_hbm [thread:$0]  %s1268, 128, %s1265, %s1252
        $region36: #{tpu_custom_call.1} parent=31 // pred_fallthru
          _
      $region32: #{tpu_custom_call.1} parent=5 // pred_fallthru
        _
      %p1271 = scmp.le.s32.totalorder 2, %s12
      // Predicated region
      $region37: #{tpu_custom_call.1} parent=5 // pred_check
        %p1272 = pneg %p1271
      $region38: #{tpu_custom_call.1} parent=5 // pred_check_branch
        %1274 = sbr.rel (%p1272) target = $region40
      $region39: #{tpu_custom_call.1} parent=5 // pred_region
        %s1275 = ssub.s32 %s12, 2
        // Predicated region
        $region41: #{tpu_custom_call.1} parent=39 // pred_check
          %p1276 = pneg %p123
        $region42: #{tpu_custom_call.1} parent=39 // pred_check_branch
          %1278 = sbr.rel (%p1276) target = $region44
        $region43: #{tpu_custom_call.1} parent=39 // pred_region
          %s1279 = sand.u32 %s108, 1
          %s1280 = scalar_lea.sflag [#allocation3], %s1279
          %s1281 = sand.u32 %s108, 1
          %s1282 = smul.addr %s1281, 8
          %s1283 = scalar_lea.vmem [#allocation2], %s1282
          %1284 = dma.done %s1280, 128
        $region44: #{tpu_custom_call.1} parent=39 // pred_fallthru
          _
      $region40: #{tpu_custom_call.1} parent=5 // pred_fallthru
        _
    $region6: #{tpu_custom_call.1} parent=1 // loop_footer
      %s16 = sadd.s32 1, %s12
    $region7: #{tpu_custom_call.1} parent=1 // loop_footer_branch
      %11 = sbr.rel target = $region3
    $region8: #{tpu_custom_call.1} parent=1 // loop_exit
      _
    %1285 = vsyncpa [#allocation3], 1
    %s1286 = scalar_lea.sflag [#allocation3], 1
    %1287 = vsyncpa %s1286, 1

</llo_original>
